<compile_context>
chip_gen: v6e
topology: v6e:2x2x1
jax: 0.10.0
libtpu: 0.0.40
codegen_flags: <defaults>
</compile_context>

<pallas_src>
import bisect
import numpy as np
import jax
import jax.numpy as jnp
from jax.experimental import pallas as pl
from jax.experimental.pallas import tpu as pltpu


# ----------------------------------------------------------------------------
# Host-side NoiseBuffer (faithful port of the PyTorch module's helper).
# TODO(synk): NoiseBuffer.sample is sequential/stateful with data-dependent
#             list insertion (bisect) -- no clean Pallas equivalent; kept on
#             host. The `s > buffer[-1][0]` branch uses buffer[0][1:] exactly
#             as the upstream PyTorch code does (faithful port).
# ----------------------------------------------------------------------------
class NoiseBuffer:
    def __init__(self, m, sigma, nb_seeds):
        self.buffer = []
        self.m = m
        self.sigma = sigma
        self.nb_seeds = nb_seeds

    def kk(self, x, y):
        return np.exp(-abs(x - y))

    def rho(self, x, y):
        return np.exp(abs(x - y)) - np.exp(-abs(x - y))

    def sample(self, s):
        buffer = self.buffer
        sigma = self.sigma
        if len(buffer) == 0:
            v0 = self.nb_seeds.normal(0, sigma)
            v1 = self.nb_seeds.normal(0, sigma)
            self.buffer.append((s, v0, v1))
            return (v0, v1)
        else:
            idx = bisect.bisect(buffer, (s, 0, 0))
            if len(buffer) == 1:
                if buffer[0][0] == s:
                    return (buffer[0][1], buffer[0][2])
            elif idx <= len(buffer) - 1 and buffer[idx][0] == s:
                return (buffer[idx][1], buffer[idx][2])
            elif idx >= 1 and buffer[idx - 1][0] == s:
                return (buffer[idx - 1][1], buffer[idx - 1][2])
            elif idx <= len(buffer) - 2 and buffer[idx + 1][0] == s:
                return (buffer[idx + 1][1], buffer[idx + 1][2])
        if s < buffer[0][0]:
            mean0 = self.kk(s, buffer[0][0]) * buffer[0][1]
            mean1 = self.kk(s, buffer[0][0]) * buffer[0][2]
            var0 = 1 - self.kk(s, buffer[0][0]) ** 2
            v0 = self.nb_seeds.normal(mean0, np.sqrt(var0) * sigma)
            v1 = self.nb_seeds.normal(mean1, np.sqrt(var0) * sigma)
            self.buffer.insert(0, (s, v0, v1))
        elif s > buffer[-1][0]:
            mean0 = self.kk(s, buffer[-1][0]) * buffer[0][1]
            mean1 = self.kk(s, buffer[-1][0]) * buffer[0][2]
            var0 = 1 - self.kk(s, buffer[-1][0]) ** 2
            v0 = self.nb_seeds.normal(mean0, np.sqrt(var0) * sigma)
            v1 = self.nb_seeds.normal(mean1, np.sqrt(var0) * sigma)
            self.buffer.insert(len(buffer), (s, v0, v1))
        else:
            idx = bisect.bisect(buffer, (s, None, None))
            sminus, eminus0, eminus1 = buffer[idx - 1]
            splus, eplus0, eplus1 = buffer[idx]
            mean0 = (self.rho(splus, s) * eminus0 + self.rho(sminus, s) * eplus0) / self.rho(sminus, splus)
            mean1 = (self.rho(splus, s) * eminus1 + self.rho(sminus, s) * eplus1) / self.rho(sminus, splus)
            var0 = 1 - (self.kk(sminus, s) * self.rho(splus, s)
                        + self.kk(splus, s) * self.rho(sminus, s)) / self.rho(sminus, splus)
            var0 = max(var0, 0.0)
            v0 = self.nb_seeds.normal(mean0, np.sqrt(var0) * sigma)
            v1 = self.nb_seeds.normal(mean1, np.sqrt(var0) * sigma)
            self.buffer.insert(idx, (s, v0, v1))
        return (v0, v1)

    def reset(self):
        self.buffer = []


# ----------------------------------------------------------------------------
# Pallas kernel: fused 3-layer MLP + noise add.
#   operands: s (TB,1), slab (8,128) [w1|b1|b2|b3|w3^T packed], w2 (H,H),
#             eps (TB,M)  ->  out (TB,M)
# ----------------------------------------------------------------------------
def private_dqn_kernel(s_ref, slab_ref, w2_ref, eps_ref, out_ref):
    H = w2_ref.shape[0]
    M = out_ref.shape[1]
    TB = out_ref.shape[0]

    slab = slab_ref[...]                 # (8, 128) single VMEM load
    w1 = slab[0:1, :H]                   # (1, H)
    b1 = slab[1:2, :H]                   # (1, H)
    b2 = slab[2:3, :H]                   # (1, H)
    b3 = slab[3:4, :M]                   # (1, M)

    # layer 1: K=1 "matmul" done on the VPU as a broadcast multiply.
    s = s_ref[...]                       # (TB, 1)
    x = jnp.maximum(s * w1 + b1, 0.0)    # (TB, H)

    # layer 2: real (TB,H)@(H,H) matmul on the MXU, f32 accumulation.
    x = jnp.dot(x, w2_ref[...], preferred_element_type=jnp.float32)
    x = jnp.maximum(x + b2, 0.0)

    # head: M is tiny (<=4) -> VPU multiply + lane reduction per output
    # column instead of a mostly-padding MXU pass.
    lane = jax.lax.broadcasted_iota(jnp.int32, (TB, M), 1)
    head = jnp.zeros((TB, M), jnp.float32)
    for m_idx in range(M):
        w3_row = slab[4 + m_idx:5 + m_idx, :H]                  # (1, H)
        col = jnp.sum(x * w3_row, axis=-1, keepdims=True)       # (TB, 1)
        head = jnp.where(lane == m_idx, col, head)

    # single store of the whole (TB, M) tile; fuse bias + per-state noise.
    out_ref[...] = head + b3 + eps_ref[...]


def _round_up(x, n):
    return ((x + n - 1) // n) * n


def pack_params(params):
    """Pack all small vectors (w1,b1,b2,b3,w3^T) into one (8,128) VMEM slab."""
    H = params["w2"].shape[0]
    M = params["w3"].shape[1]
    # TODO(synk): for M > 4 or H > 128 fall back to separate operands + MXU dot.
    assert M <= 4 and H <= 128, "slab packing assumes small head / hidden"
    slab = jnp.zeros((8, 128), jnp.float32)
    slab = slab.at[0, :H].set(params["w1"][0])
    slab = slab.at[1, :H].set(params["b1"][0])
    slab = slab.at[2, :H].set(params["b2"][0])
    slab = slab.at[3, :M].set(params["b3"][0])
    slab = slab.at[4:4 + M, :H].set(params["w3"].T)
    return slab, params["w2"]


def private_dqn_forward(s, slab, w2, eps, *, tile_b=512):
    """y = relu(relu(s@w1+b1)@w2+b2)@w3 + b3 + eps, fused in one kernel.

    Batch is tiled on a 1-D grid (weights/biases stay VMEM-resident via a
    constant index_map); the grid axis is marked "parallel" so v7x's two
    TensorCores split the batch.
    """
    B = s.shape[0]
    H = w2.shape[0]
    M = eps.shape[1]

    tb = _round_up(min(tile_b, _round_up(B, 8)), 8)
    Bp = _round_up(B, tb)
    if Bp != B:
        s = jnp.pad(s, ((0, Bp - B), (0, 0)))
        eps = jnp.pad(eps, ((0, Bp - B), (0, 0)))

    out = pl.pallas_call(
        private_dqn_kernel,
        out_shape=jax.ShapeDtypeStruct((Bp, M), jnp.float32),
        grid_spec=pltpu.PrefetchScalarGridSpec(
            num_scalar_prefetch=0,
            grid=(Bp // tb,),
            in_specs=[
                pl.BlockSpec((tb, 1), lambda i: (i, 0)),      # s tile
                pl.BlockSpec((8, 128), lambda i: (0, 0)),     # packed slab (resident)
                pl.BlockSpec((H, H), lambda i: (0, 0)),       # w2 (resident)
                pl.BlockSpec((tb, M), lambda i: (i, 0)),      # eps tile
            ],
            out_specs=pl.BlockSpec((tb, M), lambda i: (i, 0)),
        ),
        compiler_params=pltpu.CompilerParams(
            dimension_semantics=("parallel",)),
    )(s, slab, w2, eps)
    return out[:B]


# ----------------------------------------------------------------------------
# Parameter init (deterministic, torch.nn.Linear-style uniform bounds).
# Weights stored as (in_features, out_features) so y = x @ W + b.
# ----------------------------------------------------------------------------
def init_params(key, hidden, m):
    ks = jax.random.split(key, 6)

    def lin(kw, kb, fan_in, fan_out):
        bound = 1.0 / np.sqrt(fan_in)
        w = jax.random.uniform(kw, (fan_in, fan_out), jnp.float32, -bound, bound)
        b = jax.random.uniform(kb, (1, fan_out), jnp.float32, -bound, bound)
        return w, b

    w1, b1 = lin(ks[0], ks[1], 1, hidden)
    w2, b2 = lin(ks[2], ks[3], hidden, hidden)
    w3, b3 = lin(ks[4], ks[5], hidden, m)
    return dict(w1=w1, b1=b1, w2=w2, b2=b2, w3=w3, b3=b3)


if __name__ == "__main__":
    B, HIDDEN, M = 8, 16, 2
    SIGMA = 0.4

    key = jax.random.PRNGKey(0)
    k_s, k_p = jax.random.split(key)

    # States: (B, 1) float32, as fed to nn.Linear(1, hidden).
    s = jax.random.normal(k_s, (B, 1), dtype=jnp.float32)

    params = init_params(k_p, HIDDEN, M)
    slab, w2 = pack_params(params)   # done once, outside the hot path

    # Host-side noise sampling, one (v0, v1) pair per state (sigma > 0 branch).
    nb = NoiseBuffer(M, SIGMA, np.random.RandomState(0))
    s_host = np.asarray(s)
    eps_host = np.array([nb.sample(float(s_host[i, 0])) for i in range(B)],
                        dtype=np.float32)
    eps = jnp.asarray(eps_host)

    out = private_dqn_forward(s, slab, w2, eps)
    out = jax.block_until_ready(out)

    # Reference check in plain JAX (original un-packed params).
    ref = jnp.maximum(s @ params["w1"] + params["b1"], 0.0)
    ref = jnp.maximum(ref @ params["w2"] + params["b2"], 0.0)
    ref = ref @ params["w3"] + params["b3"] + eps
    assert out.shape == (B, M)
    assert jnp.allclose(out, ref, atol=1e-5), "mismatch vs reference"

    print("KERNEL_OK")
</pallas_src>

<mosaic_0001>
module attributes {stable_mosaic.version = 11 : i64} {
  func.func @private_dqn_kernel(%arg0: i32, %arg1: memref<8x1xf32, #tpu.memory_space<vmem>>, %arg2: memref<8x128xf32, #tpu.memory_space<vmem>>, %arg3: memref<16x16xf32, #tpu.memory_space<vmem>>, %arg4: memref<8x2xf32, #tpu.memory_space<vmem>>, %arg5: memref<8x2xf32, #tpu.memory_space<vmem>>) attributes {dimension_semantics = [#tpu.dimension_semantics<parallel>], iteration_bounds = array<i64: 1>, scalar_prefetch = 0 : i64, scratch_operands = 0 : i64, tpu.core_type = #tpu.core_type<tc>, window_params = [{transform_indices = @transform_0, window_bounds = array<i64: 8, 1>}, {pipeline_mode = #tpu.pipeline_mode<synchronous>, transform_indices = @transform_1, window_bounds = array<i64: 8, 128>}, {pipeline_mode = #tpu.pipeline_mode<synchronous>, transform_indices = @transform_2, window_bounds = array<i64: 16, 16>}, {transform_indices = @transform_3, window_bounds = array<i64: 8, 2>}, {transform_indices = @transform_4, window_bounds = array<i64: 8, 2>}]} {
    %c0 = arith.constant 0 : index
    %c0_0 = arith.constant 0 : index
    %0 = vector.load %arg2[%c0, %c0_0] : memref<8x128xf32, #tpu.memory_space<vmem>>, vector<8x128xf32>
    %1 = vector.extract_strided_slice %0 {offsets = [0, 0], sizes = [1, 16], strides = [1, 1]} : vector<8x128xf32> to vector<1x16xf32>
    %2 = vector.extract_strided_slice %0 {offsets = [1, 0], sizes = [1, 16], strides = [1, 1]} : vector<8x128xf32> to vector<1x16xf32>
    %3 = vector.extract_strided_slice %0 {offsets = [2, 0], sizes = [1, 16], strides = [1, 1]} : vector<8x128xf32> to vector<1x16xf32>
    %4 = vector.extract_strided_slice %0 {offsets = [3, 0], sizes = [1, 2], strides = [1, 1]} : vector<8x128xf32> to vector<1x2xf32>
    %c0_1 = arith.constant 0 : index
    %c0_2 = arith.constant 0 : index
    %5 = vector.load %arg1[%c0_1, %c0_2] : memref<8x1xf32, #tpu.memory_space<vmem>>, vector<8x1xf32>
    %6 = vector.broadcast %5 : vector<8x1xf32> to vector<8x16xf32>
    %7 = vector.broadcast %1 : vector<1x16xf32> to vector<8x16xf32>
    %8 = arith.mulf %6, %7 : vector<8x16xf32>
    %9 = vector.broadcast %2 : vector<1x16xf32> to vector<8x16xf32>
    %10 = arith.addf %8, %9 : vector<8x16xf32>
    %cst = arith.constant 0.000000e+00 : f32
    %11 = vector.broadcast %cst : f32 to vector<8x16xf32>
    %12 = arith.maximumf %10, %11 : vector<8x16xf32>
    %c0_3 = arith.constant 0 : index
    %c0_4 = arith.constant 0 : index
    %13 = vector.load %arg3[%c0_3, %c0_4] : memref<16x16xf32, #tpu.memory_space<vmem>>, vector<16x16xf32>
    %cst_5 = arith.constant dense<0.000000e+00> : vector<8x16xf32>
    %14 = tpu.matmul %12, %13, %cst_5 {dimension_numbers = #tpu.dot_dimension_numbers<[1], [0], [0], [1], [0, 0, 1, 1], [], []>} : vector<8x16xf32>, vector<16x16xf32>, vector<8x16xf32> -> vector<8x16xf32>
    %15 = vector.broadcast %3 : vector<1x16xf32> to vector<8x16xf32>
    %16 = arith.addf %14, %15 : vector<8x16xf32>
    %cst_6 = arith.constant 0.000000e+00 : f32
    %17 = vector.broadcast %cst_6 : f32 to vector<8x16xf32>
    %18 = arith.maximumf %16, %17 : vector<8x16xf32>
    %19 = tpu.iota {dimensions = array<i32: 1>} : vector<8x2xi32>
    %cst_7 = arith.constant 0.000000e+00 : f32
    %20 = vector.broadcast %cst_7 : f32 to vector<8x2xf32>
    %21 = vector.extract_strided_slice %0 {offsets = [4, 0], sizes = [1, 16], strides = [1, 1]} : vector<8x128xf32> to vector<1x16xf32>
    %22 = vector.broadcast %21 : vector<1x16xf32> to vector<8x16xf32>
    %23 = arith.mulf %18, %22 : vector<8x16xf32>
    %cst_8 = arith.constant dense<0.000000e+00> : vector<8xf32>
    %24 = vector.multi_reduction <add>, %23, %cst_8 [1] : vector<8x16xf32> to vector<8xf32>
    %25 = vector.shape_cast %24 : vector<8xf32> to vector<8x1xf32>
    %c0_i32 = arith.constant 0 : i32
    %26 = vector.broadcast %c0_i32 : i32 to vector<8x2xi32>
    %27 = arith.cmpi eq, %19, %26 : vector<8x2xi32>
    %28 = vector.shape_cast %25 : vector<8x1xf32> to vector<8x1xf32>
    %29 = vector.broadcast %28 : vector<8x1xf32> to vector<8x2xf32>
    %30 = arith.select %27, %29, %20 : vector<8x2xi1>, vector<8x2xf32>
    %31 = vector.extract_strided_slice %0 {offsets = [5, 0], sizes = [1, 16], strides = [1, 1]} : vector<8x128xf32> to vector<1x16xf32>
    %32 = vector.broadcast %31 : vector<1x16xf32> to vector<8x16xf32>
    %33 = arith.mulf %18, %32 : vector<8x16xf32>
    %cst_9 = arith.constant dense<0.000000e+00> : vector<8xf32>
    %34 = vector.multi_reduction <add>, %33, %cst_9 [1] : vector<8x16xf32> to vector<8xf32>
    %35 = vector.shape_cast %34 : vector<8xf32> to vector<8x1xf32>
    %c1_i32 = arith.constant 1 : i32
    %36 = vector.broadcast %c1_i32 : i32 to vector<8x2xi32>
    %37 = arith.cmpi eq, %19, %36 : vector<8x2xi32>
    %38 = vector.shape_cast %35 : vector<8x1xf32> to vector<8x1xf32>
    %39 = vector.broadcast %38 : vector<8x1xf32> to vector<8x2xf32>
    %40 = arith.select %37, %39, %30 : vector<8x2xi1>, vector<8x2xf32>
    %41 = vector.broadcast %4 : vector<1x2xf32> to vector<8x2xf32>
    %42 = arith.addf %40, %41 : vector<8x2xf32>
    %c0_10 = arith.constant 0 : index
    %c0_11 = arith.constant 0 : index
    %43 = vector.load %arg4[%c0_10, %c0_11] : memref<8x2xf32, #tpu.memory_space<vmem>>, vector<8x2xf32>
    %44 = arith.addf %42, %43 : vector<8x2xf32>
    %c0_12 = arith.constant 0 : index
    %c0_13 = arith.constant 0 : index
    %45 = vector.load %arg5[%c0_12, %c0_13] : memref<8x2xf32, #tpu.memory_space<vmem>>, vector<8x2xf32>
    tpu.vector_store %arg5[%c0_12, %c0_13], %44 {strides = array<i32>} : memref<8x2xf32, #tpu.memory_space<vmem>>, vector<8x2xf32>,
    return
  }
  func.func @transform_0(%arg0: i32) -> (i32, i32) {
    %c0_i32 = arith.constant 0 : i32
    %c0_i32_0 = arith.constant 0 : i32
    return %arg0, %c0_i32 : i32, i32
  }
  func.func @transform_1(%arg0: i32) -> (i32, i32) {
    %c0_i32 = arith.constant 0 : i32
    %c0_i32_0 = arith.constant 0 : i32
    %c0_i32_1 = arith.constant 0 : i32
    return %c0_i32, %c0_i32_0 : i32, i32
  }
  func.func @transform_2(%arg0: i32) -> (i32, i32) {
    %c0_i32 = arith.constant 0 : i32
    %c0_i32_0 = arith.constant 0 : i32
    %c0_i32_1 = arith.constant 0 : i32
    return %c0_i32, %c0_i32_0 : i32, i32
  }
  func.func @transform_3(%arg0: i32) -> (i32, i32) {
    %c0_i32 = arith.constant 0 : i32
    %c0_i32_0 = arith.constant 0 : i32
    return %arg0, %c0_i32 : i32, i32
  }
  func.func @transform_4(%arg0: i32) -> (i32, i32) {
    %c0_i32 = arith.constant 0 : i32
    %c0_i32_0 = arith.constant 0 : i32
    return %arg0, %c0_i32 : i32, i32
  }
}

</mosaic_0001>

<llo_original>
// kernel: tpu_custom_call.1
$region0: #{tpu_custom_call.1}
  #allocation0 [shape = 'u32[]', space=smem, size = 0x4, offset = 0x4, fixed_abs, tag = 'smem constant byte address 0x4 - core index']
  #allocation1 [shape = 'u32[144,128]{1,0:T(1,128)}', space=vmem, size = 0x12000, scoped, tag = 'internal scratch']
  %s0 = inlined_call_operand.vmem [shape: f32[8,1], index: 0, kind: input, shape index: {}]
  %s1 = inlined_call_operand.hbm [shape: f32[8,128], index: 1, kind: input, shape index: {}]
  %s2 = inlined_call_operand.vmem [shape: f32[16,16], index: 2, kind: input, shape index: {}]
  %s3 = inlined_call_operand.vmem [shape: f32[8,2], index: 3, kind: input, shape index: {}]
  %s4 = inlined_call_operand.vmem [shape: f32[8,2], index: 4, kind: output, shape index: {}]
  %s5 = sld [smem:[#allocation0]]
  $region30: #{tpu_custom_call.1} parent=0
    _
  %s7 = ssub.s32 1, %s5
  %s8 = scalar_select 0, %s7, %s5
  $region1: #{tpu_custom_call.1} parent=0
    #allocation2 [shape = 'u8[4096]{0}', space=vmem, size = 0x1000, scoped, tag = 'input window, operand 1, single buffered']
    #allocation3 [shape = 's32[1]{0}', space=sflag, size = 0x4, scoped, tag = 'scoped memory for tpu_custom_call.1']
    %9 = vsyncpa [#allocation3], 0
    // Predicated region
    $region2: #{tpu_custom_call.1} parent=1 // pred_check
      _
    $region3: #{tpu_custom_call.1} parent=1 // pred_check_branch
      %11 = sbr.rel (0) target = $region5
    $region4: #{tpu_custom_call.1} parent=1 // pred_region
      _
    $region5: #{tpu_custom_call.1} parent=1 // pred_fallthru
      _
    // Predicated region
    $region6: #{tpu_custom_call.1} parent=1 // pred_check
      _
    $region7: #{tpu_custom_call.1} parent=1 // pred_check_branch
      %13 = sbr.rel (0) target = $region9
    $region8: #{tpu_custom_call.1} parent=1 // pred_region
      %s15 = ssub.s32 128, 128
      %16 = vsyncadd [#allocation3], %s15
      %s18 = sshll.u32 [#allocation2], 4
      %s19 = int_to_ptr.vmem [resolvable:$true] %s18
      %21 = dma.hbm_to_vmem [thread:$0]  %s1, 128, %s19, [#allocation3]
    $region9: #{tpu_custom_call.1} parent=1 // pred_fallthru
      _
    // Predicated region
    $region10: #{tpu_custom_call.1} parent=1 // pred_check
      _
    $region11: #{tpu_custom_call.1} parent=1 // pred_check_branch
      %23 = sbr.rel (0) target = $region13
    $region12: #{tpu_custom_call.1} parent=1 // pred_region
      _
    $region13: #{tpu_custom_call.1} parent=1 // pred_fallthru
      _
    // Predicated region
    $region14: #{tpu_custom_call.1} parent=1 // pred_check
      _
    $region15: #{tpu_custom_call.1} parent=1 // pred_check_branch
      %25 = sbr.rel (0) target = $region17
    $region16: #{tpu_custom_call.1} parent=1 // pred_region
      _
    $region17: #{tpu_custom_call.1} parent=1 // pred_fallthru
      _
    // Predicated region
    $region18: #{tpu_custom_call.1} parent=1 // pred_check
      _
    $region19: #{tpu_custom_call.1} parent=1 // pred_check_branch
      %27 = sbr.rel (0) target = $region21
    $region20: #{tpu_custom_call.1} parent=1 // pred_region
      %28 = dma.done [#allocation3], 128
    $region21: #{tpu_custom_call.1} parent=1 // pred_fallthru
      _
    %v29 = vld [vmem:[#allocation2] sm:$0xff]
    %v30 = vld [vmem:[%s0] sm:$0xff]
    %32 = vset.pattern.permute.xlu0 0
    %33 = vperm.xlu0 %32, %v30
    %v34 = vpop.permute.xlu0 %33
    %v36 = vlaneseq
    %v37 = vshrl.u32 %v36, 7
    %v38 = vsub.s32 0, %v37
    %v39 = vrot.slane %v29, %v38
    %v40 = vmul.f32 %v34, %v39
    %v41 = vlaneseq
    %v42 = vshrl.u32 %v41, 7
    %v43 = vsub.s32 1, %v42
    %v44 = vrot.slane %v29, %v43
    %v45 = vadd.f32 %v40, %v44
    %v46 = vmax.f32 %v45, 0.0
    %v47 = vld [vmem:[%s2] sm:$0xff]
    %v48 = vld [vmem:[%s2 + $0x8] sm:$0xff]
    %v49 = vlaneseq
    %v50 = vshrl.u32 %v49, 7
    %v51 = vsub.s32 2, %v50
    %v52 = vrot.slane %v29, %v51
    %vm53 = vcmask 130048
    %v55 = vsel %vm53, %v46, 0
    %57 = vmatprep.subr.mxu0 0.0
    %58 = vmatpush1.msra.mxu0 0.0
    %59 = vmatprep.subr.mxu0 0.0
    %60 = vmatpush1.msra.mxu0 0.0
    %61 = vmatprep.subr.mxu0 0.0
    %62 = vmatpush1.msra.mxu0 0.0
    %63 = vmatprep.subr.mxu0 0.0
    %64 = vmatpush1.msra.mxu0 0.0
    %65 = vmatprep.subr.mxu0 0.0
    %66 = vmatpush1.msra.mxu0 0.0
    %67 = vmatprep.subr.mxu0 0.0
    %68 = vmatpush1.msra.mxu0 0.0
    %69 = vmatprep.subr.mxu0 0.0
    %70 = vmatpush1.msra.mxu0 0.0
    %71 = vmatprep.subr.mxu0 0.0
    %72 = vmatpush1.msra.mxu0 0.0
    %73 = vmatprep.subr.mxu0 0.0
    %74 = vmatpush1.msra.mxu0 0.0
    %75 = vmatprep.subr.mxu0 0.0
    %76 = vmatpush1.msra.mxu0 0.0
    %77 = vmatprep.subr.mxu0 0.0
    %78 = vmatpush1.msra.mxu0 0.0
    %79 = vmatprep.subr.mxu0 0.0
    %80 = vmatpush1.msra.mxu0 0.0
    %81 = vmatprep.subr.mxu0 0.0
    %82 = vmatpush1.msra.mxu0 0.0
    %83 = vmatprep.subr.mxu0 0.0
    %84 = vmatpush1.msra.mxu0 0.0
    %85 = vmatprep.subr.mxu0 0.0
    %86 = vmatpush1.msra.mxu0 %v48
    %87 = vmatprep.subr.mxu0 0.0
    %88 = vmatpush1.msra.mxu0 %v47
    %89 = vmatprep.subr.mxu0 0.0
    %90 = vmatpush2.msra.mxu0 0.0
    %91 = vmatprep.subr.mxu0 0.0
    %92 = vmatpush2.msra.mxu0 0.0
    %93 = vmatprep.subr.mxu0 0.0
    %94 = vmatpush2.msra.mxu0 0.0
    %95 = vmatprep.subr.mxu0 0.0
    %96 = vmatpush2.msra.mxu0 0.0
    %97 = vmatprep.subr.mxu0 0.0
    %98 = vmatpush2.msra.mxu0 0.0
    %99 = vmatprep.subr.mxu0 0.0
    %100 = vmatpush2.msra.mxu0 0.0
    %101 = vmatprep.subr.mxu0 0.0
    %102 = vmatpush2.msra.mxu0 0.0
    %103 = vmatprep.subr.mxu0 0.0
    %104 = vmatpush2.msra.mxu0 0.0
    %105 = vmatprep.subr.mxu0 0.0
    %106 = vmatpush2.msra.mxu0 0.0
    %107 = vmatprep.subr.mxu0 0.0
    %108 = vmatpush2.msra.mxu0 0.0
    %109 = vmatprep.subr.mxu0 0.0
    %110 = vmatpush2.msra.mxu0 0.0
    %111 = vmatprep.subr.mxu0 0.0
    %112 = vmatpush2.msra.mxu0 0.0
    %113 = vmatprep.subr.mxu0 0.0
    %114 = vmatpush2.msra.mxu0 0.0
    %115 = vmatprep.subr.mxu0 0.0
    %116 = vmatpush2.msra.mxu0 0.0
    %117 = vmatprep.subr.mxu0 0.0
    %118 = vmatpush2.msra.mxu0 0.0
    %119 = vmatprep.subr.mxu0 0.0
    %120 = vmatpush2.msra.mxu0 0.0
    %121 = vmatprep.mubr.f32.mxu0 0.0
    %122 = vmatmul.mubr.f32.gmra.mxu0 %v55
    %v123 = vpop.f32.mrf.mxu0
    %v124 = vadd.f32 %v52, %v123
    %v125 = vpop.f32.mrf.mxu0
    %126 = vdwg.mxu0
    %v127 = vmax.f32 %v124, 0.0
    %v128 = vlaneseq
    %v129 = vand.u32 %v128, 127
    %v130 = vlaneseq
    %v131 = vshrl.u32 %v130, 7
    %v132 = vsub.s32 4, %v131
    %v133 = vrot.slane %v29, %v132
    %v134 = vmul.f32 %v127, %v133
    %v135 = vsel %vm53, %v134, 0.0
    %136 = vadd.xlane.f32.xlu0 %v135
    %v137 = vpop.xlane.xlu0 %136
    %vm138 = vcmp.eq.s32.totalorder %v129, 0
    %v139 = vsel %vm138, %v137, 0.0
    %v140 = vlaneseq
    %v141 = vshrl.u32 %v140, 7
    %v142 = vsub.s32 5, %v141
    %v143 = vrot.slane %v29, %v142
    %v144 = vmul.f32 %v127, %v143
    %v145 = vsel %vm53, %v144, 0.0
    %146 = vadd.xlane.f32.xlu0 %v145
    %v147 = vpop.xlane.xlu0 %146
    %vm148 = vcmp.eq.s32.totalorder %v129, 1
    %v149 = vsel %vm148, %v147, %v139
    %v150 = vlaneseq
    %v151 = vshrl.u32 %v150, 7
    %v152 = vsub.s32 3, %v151
    %v153 = vrot.slane %v29, %v152
    %v154 = vadd.f32 %v149, %v153
    %v155 = vld [vmem:[%s3] sm:$0xff]
    %v156 = vadd.f32 %v154, %v155
    %vm157 = vcmask 15360
    %158 = vst.msk [vmem:[%s4] sm:$0xff] %vm157, %v156
    // Predicated region
    $region22: #{tpu_custom_call.1} parent=1 // pred_check
      _
    $region23: #{tpu_custom_call.1} parent=1 // pred_check_branch
      %160 = sbr.rel (0) target = $region25
    $region24: #{tpu_custom_call.1} parent=1 // pred_region
      _
    $region25: #{tpu_custom_call.1} parent=1 // pred_fallthru
      _
    // Predicated region
    $region26: #{tpu_custom_call.1} parent=1 // pred_check
      _
    $region27: #{tpu_custom_call.1} parent=1 // pred_check_branch
      %162 = sbr.rel (0) target = $region29
    $region28: #{tpu_custom_call.1} parent=1 // pred_region
      _
    $region29: #{tpu_custom_call.1} parent=1 // pred_fallthru
      _
    %163 = vsyncpa [#allocation3], 1

</llo_original>
